<compile_context>
chip_gen: v7x
topology: tpu7x:2x2x1
jax: 0.10.0
libtpu: 0.0.40
codegen_flags: <defaults>
</compile_context>

<pallas_src>
import functools

import numpy as np
import jax
import jax.numpy as jnp
from jax.experimental import pallas as pl
from jax.experimental.pallas import tpu as pltpu

LEAKY_SLOPE = 0.2


# ------------------------------ layer configs ------------------------------- #

def layer_defs(feature_dim):
    F = feature_dim
    # (Cin, Cout, K, stride, pad, leaky_after)
    return [
        (1,      F,      4, 2, 1, True),
        (F,      2 * F,  4, 2, 1, True),
        (2 * F,  4 * F,  3, 2, 1, True),
        (4 * F,  8 * F,  3, 2, 1, True),
        (8 * F,  16 * F, 2, 2, 1, True),
        (16 * F, 32 * F, 2, 2, 1, True),
        (32 * F, 1,      2, 1, 0, False),
    ]


# ------------------------------ Pallas kernel ------------------------------- #

def _fused_discriminator_kernel(*refs, leaky_flags):
    """Whole Discriminator forward pass in a single grid-less invocation.

    refs = [x, (Mt_i, brow_i) * n_layers, fc_w, fc_b, out]
      x      : (B, L0)                activation rows, (pos, chan) flatten on lanes
      Mt_i   : (Lin*Cin, Lout*Cout)   dense conv-as-matmul operator for layer i
      brow_i : (1, Lout*Cout)         bias broadcast over output positions
      fc_w   : (1, 1), fc_b : (1, 1)
      out    : (B, 1)
    """
    n_layers = len(leaky_flags)
    x_ref = refs[0]
    layer_refs = refs[1:1 + 2 * n_layers]
    fc_w_ref = refs[1 + 2 * n_layers]
    fc_b_ref = refs[2 + 2 * n_layers]
    o_ref = refs[3 + 2 * n_layers]

    a = x_ref[...].astype(jnp.float32)                       # (B, Lin*Cin)
    for i, leaky in enumerate(leaky_flags):                  # static unroll (7 layers)
        mt = layer_refs[2 * i][...]                          # (Lin*Cin, Lout*Cout)
        brow = layer_refs[2 * i + 1][...]                    # (1, Lout*Cout)
        y = jnp.dot(a, mt, preferred_element_type=jnp.float32) + brow
        if leaky:
            y = jnp.where(y >= 0, y, LEAKY_SLOPE * y)
        # Dropout layers: identity (eval semantics).
        a = y                                                # (B, Lout*Cout)

    # a is now (B, 1) == conv_out.view(B, -1); fuse Linear(1,1) + Sigmoid here.
    z = a * fc_w_ref[...] + fc_b_ref[...]
    o_ref[...] = (1.0 / (1.0 + jnp.exp(-z))).astype(o_ref.dtype)


# ------------------------------ host wrapper -------------------------------- #

def _tap_selector(lin, lout, stride, pad, k):
    """0/1 matrix S_k (Lin, Lout): S_k[src, lo]=1 iff src == lo*stride + k - pad is
    a valid (unpadded) input position.  Pure compile-time numpy constant."""
    s = np.zeros((lin, lout), np.float32)
    for lo in range(lout):
        src = lo * stride + k - pad
        if 0 <= src < lin:
            s[src, lo] = 1.0
    return s


def discriminator_forward(x, conv_params, fc_w, fc_b):
    """Single fused pallas_call for the whole Discriminator forward."""
    B, cin0, L = x.shape
    assert cin0 == 1, "Discriminator expects a single input channel"

    inputs = [x.reshape(B, L).astype(jnp.float32)]           # (pos, chan) flatten, Cin=1
    leaky_flags = []
    lin = L
    for p in conv_params:
        cout, cin, K = p["w"].shape
        stride, pad = p["stride"], p["pad"]
        lout = (lin + 2 * pad - K) // stride + 1
        assert lout >= 1, "input length too small for the conv stack"

        # Dense conv operator: Y(B, Lout*Cout) = A(B, Lin*Cin) @ Mt + brow.
        w = p["w"].astype(jnp.float32)
        mt = jnp.zeros((lin * cin, lout * cout), jnp.float32)
        for k in range(K):                                    # static, K <= 4
            s_k = jnp.asarray(_tap_selector(lin, lout, stride, pad, k))
            mt = mt + jnp.kron(s_k, w[:, :, k].T)             # (Lin*Cin, Lout*Cout)
        brow = jnp.tile(p["b"].astype(jnp.float32), lout).reshape(1, lout * cout)

        inputs.append(mt)
        inputs.append(brow)
        leaky_flags.append(bool(p["leaky"]))
        lin = lout

    assert lin == 1 and conv_params[-1]["w"].shape[0] == 1, \
        "conv stack must collapse to (B, 1, 1)"
    inputs.append(fc_w.reshape(1, 1).astype(jnp.float32))
    inputs.append(fc_b.reshape(1, 1).astype(jnp.float32))

    kernel = functools.partial(_fused_discriminator_kernel,
                               leaky_flags=tuple(leaky_flags))
    vmem_spec = pl.BlockSpec(memory_space=pltpu.MemorySpace.VMEM)
    # Everything (activations + all pre-lowered weights) is < 200 KB, so a single
    # grid-less invocation with whole-array VMEM blocks is the fastest structure:
    # one launch, one DMA per operand, one output DMA.
    return pl.pallas_call(
        kernel,
        out_shape=jax.ShapeDtypeStruct((B, 1), x.dtype),
        in_specs=[vmem_spec] * len(inputs),
        out_specs=vmem_spec,
    )(*inputs)


# ------------------------------ params / reference --------------------------- #

def init_params(key, feature_dim):
    conv_params = []
    for (cin, cout, k, s, p, leaky) in layer_defs(feature_dim):
        key, kw, kb = jax.random.split(key, 3)
        w = jax.random.normal(kw, (cout, cin, k), jnp.float32) * 0.1
        b = jax.random.normal(kb, (cout,), jnp.float32) * 0.1
        conv_params.append(dict(w=w, b=b, stride=s, pad=p, leaky=leaky))
    key, kw, kb = jax.random.split(key, 3)
    fc_w = jax.random.normal(kw, (1, 1), jnp.float32) * 0.1
    fc_b = jax.random.normal(kb, (1,), jnp.float32) * 0.1
    return conv_params, fc_w, fc_b


def reference_forward(x, conv_params, fc_w, fc_b):
    """Pure-JAX reference (lax conv) for correctness checking."""
    for p in conv_params:
        y = jax.lax.conv_general_dilated(
            x, p["w"], window_strides=(p["stride"],),
            padding=[(p["pad"], p["pad"])],
            dimension_numbers=("NCH", "OIH", "NCH"))
        y = y + p["b"][None, :, None]
        if p["leaky"]:
            y = jnp.where(y >= 0, y, LEAKY_SLOPE * y)
        x = y
    x = x.reshape(x.shape[0], -1)
    return jax.nn.sigmoid(x @ fc_w.T + fc_b[None, :])


# ----------------------------------- Main ----------------------------------- #

if __name__ == "__main__":
    B, L, FEATURE_DIM = 2, 32, 4   # L=32 collapses to length 1 after the conv stack
    key = jax.random.PRNGKey(0)
    kx, kp = jax.random.split(key)
    x = jax.random.normal(kx, (B, 1, L), jnp.float32)

    conv_params, fc_w, fc_b = init_params(kp, FEATURE_DIM)

    out = discriminator_forward(x, conv_params, fc_w, fc_b)
    out = jax.block_until_ready(out)

    ref = reference_forward(x, conv_params, fc_w, fc_b)
    assert out.shape == (B, 1), out.shape
    assert jnp.allclose(out, ref, rtol=1e-3, atol=1e-3), (out, ref)

    print("KERNEL_OK")
</pallas_src>

<mosaic_0001>
module attributes {stable_mosaic.version = 11 : i64} {
  func.func @_fused_discriminator_kernel(%arg0: memref<2x32xf32, #tpu.memory_space<vmem>>, %arg1: memref<32x64xf32, #tpu.memory_space<vmem>>, %arg2: memref<1x64xf32, #tpu.memory_space<vmem>>, %arg3: memref<64x64xf32, #tpu.memory_space<vmem>>, %arg4: memref<1x64xf32, #tpu.memory_space<vmem>>, %arg5: memref<64x64xf32, #tpu.memory_space<vmem>>, %arg6: memref<1x64xf32, #tpu.memory_space<vmem>>, %arg7: memref<64x64xf32, #tpu.memory_space<vmem>>, %arg8: memref<1x64xf32, #tpu.memory_space<vmem>>, %arg9: memref<64x128xf32, #tpu.memory_space<vmem>>, %arg10: memref<1x128xf32, #tpu.memory_space<vmem>>, %arg11: memref<128x256xf32, #tpu.memory_space<vmem>>, %arg12: memref<1x256xf32, #tpu.memory_space<vmem>>, %arg13: memref<256x1xf32, #tpu.memory_space<vmem>>, %arg14: memref<1x1xf32, #tpu.memory_space<vmem>>, %arg15: memref<1x1xf32, #tpu.memory_space<vmem>>, %arg16: memref<1x1xf32, #tpu.memory_space<vmem>>, %arg17: memref<2x1xf32, #tpu.memory_space<vmem>>) attributes {dimension_semantics = [], scalar_prefetch = 0 : i64, scratch_operands = 0 : i64, tpu.core_type = #tpu.core_type<tc>} {
    %c0 = arith.constant 0 : index
    %c0_0 = arith.constant 0 : index
    %0 = vector.load %arg0[%c0, %c0_0] : memref<2x32xf32, #tpu.memory_space<vmem>>, vector<2x32xf32>
    %c0_1 = arith.constant 0 : index
    %c0_2 = arith.constant 0 : index
    %1 = vector.load %arg1[%c0_1, %c0_2] : memref<32x64xf32, #tpu.memory_space<vmem>>, vector<32x64xf32>
    %c0_3 = arith.constant 0 : index
    %c0_4 = arith.constant 0 : index
    %2 = vector.load %arg2[%c0_3, %c0_4] : memref<1x64xf32, #tpu.memory_space<vmem>>, vector<1x64xf32>
    %cst = arith.constant dense<0.000000e+00> : vector<2x64xf32>
    %3 = tpu.matmul %0, %1, %cst {dimension_numbers = #tpu.dot_dimension_numbers<[1], [0], [0], [1], [0, 0, 1, 1], [], []>} : vector<2x32xf32>, vector<32x64xf32>, vector<2x64xf32> -> vector<2x64xf32>
    %4 = vector.broadcast %2 : vector<1x64xf32> to vector<2x64xf32>
    %5 = arith.addf %3, %4 : vector<2x64xf32>
    %cst_5 = arith.constant 0.000000e+00 : f32
    %6 = vector.broadcast %cst_5 : f32 to vector<2x64xf32>
    %7 = arith.cmpf oge, %5, %6 : vector<2x64xf32>
    %cst_6 = arith.constant 2.000000e-01 : f32
    %8 = vector.broadcast %cst_6 : f32 to vector<2x64xf32>
    %9 = arith.mulf %8, %5 : vector<2x64xf32>
    %10 = arith.select %7, %5, %9 : vector<2x64xi1>, vector<2x64xf32>
    %c0_7 = arith.constant 0 : index
    %c0_8 = arith.constant 0 : index
    %11 = vector.load %arg3[%c0_7, %c0_8] : memref<64x64xf32, #tpu.memory_space<vmem>>, vector<64x64xf32>
    %c0_9 = arith.constant 0 : index
    %c0_10 = arith.constant 0 : index
    %12 = vector.load %arg4[%c0_9, %c0_10] : memref<1x64xf32, #tpu.memory_space<vmem>>, vector<1x64xf32>
    %cst_11 = arith.constant dense<0.000000e+00> : vector<2x64xf32>
    %13 = tpu.matmul %10, %11, %cst_11 {dimension_numbers = #tpu.dot_dimension_numbers<[1], [0], [0], [1], [0, 0, 1, 1], [], []>} : vector<2x64xf32>, vector<64x64xf32>, vector<2x64xf32> -> vector<2x64xf32>
    %14 = vector.broadcast %12 : vector<1x64xf32> to vector<2x64xf32>
    %15 = arith.addf %13, %14 : vector<2x64xf32>
    %cst_12 = arith.constant 0.000000e+00 : f32
    %16 = vector.broadcast %cst_12 : f32 to vector<2x64xf32>
    %17 = arith.cmpf oge, %15, %16 : vector<2x64xf32>
    %cst_13 = arith.constant 2.000000e-01 : f32
    %18 = vector.broadcast %cst_13 : f32 to vector<2x64xf32>
    %19 = arith.mulf %18, %15 : vector<2x64xf32>
    %20 = arith.select %17, %15, %19 : vector<2x64xi1>, vector<2x64xf32>
    %c0_14 = arith.constant 0 : index
    %c0_15 = arith.constant 0 : index
    %21 = vector.load %arg5[%c0_14, %c0_15] : memref<64x64xf32, #tpu.memory_space<vmem>>, vector<64x64xf32>
    %c0_16 = arith.constant 0 : index
    %c0_17 = arith.constant 0 : index
    %22 = vector.load %arg6[%c0_16, %c0_17] : memref<1x64xf32, #tpu.memory_space<vmem>>, vector<1x64xf32>
    %cst_18 = arith.constant dense<0.000000e+00> : vector<2x64xf32>
    %23 = tpu.matmul %20, %21, %cst_18 {dimension_numbers = #tpu.dot_dimension_numbers<[1], [0], [0], [1], [0, 0, 1, 1], [], []>} : vector<2x64xf32>, vector<64x64xf32>, vector<2x64xf32> -> vector<2x64xf32>
    %24 = vector.broadcast %22 : vector<1x64xf32> to vector<2x64xf32>
    %25 = arith.addf %23, %24 : vector<2x64xf32>
    %cst_19 = arith.constant 0.000000e+00 : f32
    %26 = vector.broadcast %cst_19 : f32 to vector<2x64xf32>
    %27 = arith.cmpf oge, %25, %26 : vector<2x64xf32>
    %cst_20 = arith.constant 2.000000e-01 : f32
    %28 = vector.broadcast %cst_20 : f32 to vector<2x64xf32>
    %29 = arith.mulf %28, %25 : vector<2x64xf32>
    %30 = arith.select %27, %25, %29 : vector<2x64xi1>, vector<2x64xf32>
    %c0_21 = arith.constant 0 : index
    %c0_22 = arith.constant 0 : index
    %31 = vector.load %arg7[%c0_21, %c0_22] : memref<64x64xf32, #tpu.memory_space<vmem>>, vector<64x64xf32>
    %c0_23 = arith.constant 0 : index
    %c0_24 = arith.constant 0 : index
    %32 = vector.load %arg8[%c0_23, %c0_24] : memref<1x64xf32, #tpu.memory_space<vmem>>, vector<1x64xf32>
    %cst_25 = arith.constant dense<0.000000e+00> : vector<2x64xf32>
    %33 = tpu.matmul %30, %31, %cst_25 {dimension_numbers = #tpu.dot_dimension_numbers<[1], [0], [0], [1], [0, 0, 1, 1], [], []>} : vector<2x64xf32>, vector<64x64xf32>, vector<2x64xf32> -> vector<2x64xf32>
    %34 = vector.broadcast %32 : vector<1x64xf32> to vector<2x64xf32>
    %35 = arith.addf %33, %34 : vector<2x64xf32>
    %cst_26 = arith.constant 0.000000e+00 : f32
    %36 = vector.broadcast %cst_26 : f32 to vector<2x64xf32>
    %37 = arith.cmpf oge, %35, %36 : vector<2x64xf32>
    %cst_27 = arith.constant 2.000000e-01 : f32
    %38 = vector.broadcast %cst_27 : f32 to vector<2x64xf32>
    %39 = arith.mulf %38, %35 : vector<2x64xf32>
    %40 = arith.select %37, %35, %39 : vector<2x64xi1>, vector<2x64xf32>
    %c0_28 = arith.constant 0 : index
    %c0_29 = arith.constant 0 : index
    %41 = vector.load %arg9[%c0_28, %c0_29] : memref<64x128xf32, #tpu.memory_space<vmem>>, vector<64x128xf32>
    %c0_30 = arith.constant 0 : index
    %c0_31 = arith.constant 0 : index
    %42 = vector.load %arg10[%c0_30, %c0_31] : memref<1x128xf32, #tpu.memory_space<vmem>>, vector<1x128xf32>
    %cst_32 = arith.constant dense<0.000000e+00> : vector<2x128xf32>
    %43 = tpu.matmul %40, %41, %cst_32 {dimension_numbers = #tpu.dot_dimension_numbers<[1], [0], [0], [1], [0, 0, 1, 1], [], []>} : vector<2x64xf32>, vector<64x128xf32>, vector<2x128xf32> -> vector<2x128xf32>
    %44 = vector.broadcast %42 : vector<1x128xf32> to vector<2x128xf32>
    %45 = arith.addf %43, %44 : vector<2x128xf32>
    %cst_33 = arith.constant 0.000000e+00 : f32
    %46 = vector.broadcast %cst_33 : f32 to vector<2x128xf32>
    %47 = arith.cmpf oge, %45, %46 : vector<2x128xf32>
    %cst_34 = arith.constant 2.000000e-01 : f32
    %48 = vector.broadcast %cst_34 : f32 to vector<2x128xf32>
    %49 = arith.mulf %48, %45 : vector<2x128xf32>
    %50 = arith.select %47, %45, %49 : vector<2x128xi1>, vector<2x128xf32>
    %c0_35 = arith.constant 0 : index
    %c0_36 = arith.constant 0 : index
    %51 = vector.load %arg11[%c0_35, %c0_36] : memref<128x256xf32, #tpu.memory_space<vmem>>, vector<128x256xf32>
    %c0_37 = arith.constant 0 : index
    %c0_38 = arith.constant 0 : index
    %52 = vector.load %arg12[%c0_37, %c0_38] : memref<1x256xf32, #tpu.memory_space<vmem>>, vector<1x256xf32>
    %cst_39 = arith.constant dense<0.000000e+00> : vector<2x256xf32>
    %53 = tpu.matmul %50, %51, %cst_39 {dimension_numbers = #tpu.dot_dimension_numbers<[1], [0], [0], [1], [0, 0, 1, 1], [], []>} : vector<2x128xf32>, vector<128x256xf32>, vector<2x256xf32> -> vector<2x256xf32>
    %54 = vector.broadcast %52 : vector<1x256xf32> to vector<2x256xf32>
    %55 = arith.addf %53, %54 : vector<2x256xf32>
    %cst_40 = arith.constant 0.000000e+00 : f32
    %56 = vector.broadcast %cst_40 : f32 to vector<2x256xf32>
    %57 = arith.cmpf oge, %55, %56 : vector<2x256xf32>
    %cst_41 = arith.constant 2.000000e-01 : f32
    %58 = vector.broadcast %cst_41 : f32 to vector<2x256xf32>
    %59 = arith.mulf %58, %55 : vector<2x256xf32>
    %60 = arith.select %57, %55, %59 : vector<2x256xi1>, vector<2x256xf32>
    %c0_42 = arith.constant 0 : index
    %c0_43 = arith.constant 0 : index
    %61 = vector.load %arg13[%c0_42, %c0_43] : memref<256x1xf32, #tpu.memory_space<vmem>>, vector<256x1xf32>
    %c0_44 = arith.constant 0 : index
    %c0_45 = arith.constant 0 : index
    %62 = vector.load %arg14[%c0_44, %c0_45] : memref<1x1xf32, #tpu.memory_space<vmem>>, vector<1x1xf32>
    %cst_46 = arith.constant dense<0.000000e+00> : vector<2x1xf32>
    %63 = tpu.matmul %60, %61, %cst_46 {dimension_numbers = #tpu.dot_dimension_numbers<[1], [0], [0], [1], [0, 0, 1, 1], [], []>} : vector<2x256xf32>, vector<256x1xf32>, vector<2x1xf32> -> vector<2x1xf32>
    %64 = vector.broadcast %62 : vector<1x1xf32> to vector<2x1xf32>
    %65 = arith.addf %63, %64 : vector<2x1xf32>
    %c0_47 = arith.constant 0 : index
    %c0_48 = arith.constant 0 : index
    %66 = vector.load %arg15[%c0_47, %c0_48] : memref<1x1xf32, #tpu.memory_space<vmem>>, vector<1x1xf32>
    %67 = vector.broadcast %66 : vector<1x1xf32> to vector<2x1xf32>
    %68 = arith.mulf %65, %67 : vector<2x1xf32>
    %c0_49 = arith.constant 0 : index
    %c0_50 = arith.constant 0 : index
    %69 = vector.load %arg16[%c0_49, %c0_50] : memref<1x1xf32, #tpu.memory_space<vmem>>, vector<1x1xf32>
    %70 = vector.broadcast %69 : vector<1x1xf32> to vector<2x1xf32>
    %71 = arith.addf %68, %70 : vector<2x1xf32>
    %cst_51 = arith.constant 0.000000e+00 : f32
    %72 = vector.broadcast %cst_51 : f32 to vector<2x1xf32>
    %73 = arith.subf %72, %71 : vector<2x1xf32>
    %74 = math.exp %73 : vector<2x1xf32>
    %cst_52 = arith.constant 1.000000e+00 : f32
    %75 = vector.broadcast %cst_52 : f32 to vector<2x1xf32>
    %76 = arith.addf %75, %74 : vector<2x1xf32>
    %cst_53 = arith.constant 1.000000e+00 : f32
    %77 = vector.broadcast %cst_53 : f32 to vector<2x1xf32>
    %78 = arith.divf %77, %76 : vector<2x1xf32>
    %c0_54 = arith.constant 0 : index
    %c0_55 = arith.constant 0 : index
    %79 = vector.load %arg17[%c0_54, %c0_55] : memref<2x1xf32, #tpu.memory_space<vmem>>, vector<2x1xf32>
    tpu.vector_store %arg17[%c0_54, %c0_55], %78 {strides = array<i32>} : memref<2x1xf32, #tpu.memory_space<vmem>>, vector<2x1xf32>,
    return
  }
}

</mosaic_0001>

<llo_original>
// kernel: tpu_custom_call.1
$region0: #{tpu_custom_call.1}
  #allocation0 [shape = 'u32[]', space=smem, size = 0x4, offset = 0x4, fixed_abs, tag = 'smem constant byte address 0x4 - core index']
  #allocation1 [shape = 'u32[144,128]{1,0:T(1,128)}', space=vmem, size = 0x12000, scoped, tag = 'internal scratch']
  #allocation2 [shape = 'f32[1,1]{1,0:T(1,128)S(1)}', space=vmem, size = 0x200, scoped, tag = 'scoped memory for tpu_custom_call.1']
  #allocation3 [shape = 'f32[1,1]{1,0:T(1,128)S(1)}', space=vmem, size = 0x200, scoped, tag = 'scoped memory for tpu_custom_call.1']
  #allocation4 [shape = 'f32[1,1]{1,0:T(1,128)S(1)}', space=vmem, size = 0x200, scoped, tag = 'scoped memory for tpu_custom_call.1']
  %s0 = inlined_call_operand.vmem [shape: f32[2,32], index: 0, kind: input, shape index: {}]
  %s1 = inlined_call_operand.vmem [shape: f32[32,64], index: 1, kind: input, shape index: {}]
  %s2 = inlined_call_operand.vmem [shape: f32[1,64], index: 2, kind: input, shape index: {}]
  %s3 = inlined_call_operand.hbm [shape: f32[64,64], index: 3, kind: input, shape index: {}]
  %s4 = inlined_call_operand.vmem [shape: f32[1,64], index: 4, kind: input, shape index: {}]
  %s5 = inlined_call_operand.hbm [shape: f32[64,64], index: 5, kind: input, shape index: {}]
  %s6 = inlined_call_operand.vmem [shape: f32[1,64], index: 6, kind: input, shape index: {}]
  %s7 = inlined_call_operand.hbm [shape: f32[64,64], index: 7, kind: input, shape index: {}]
  %s8 = inlined_call_operand.vmem [shape: f32[1,64], index: 8, kind: input, shape index: {}]
  %s9 = inlined_call_operand.hbm [shape: f32[64,128], index: 9, kind: input, shape index: {}]
  %s10 = inlined_call_operand.vmem [shape: f32[1,128], index: 10, kind: input, shape index: {}]
  %s11 = inlined_call_operand.vmem [shape: f32[128,256], index: 11, kind: input, shape index: {}]
  %s12 = inlined_call_operand.vmem [shape: f32[1,256], index: 12, kind: input, shape index: {}]
  %s13 = inlined_call_operand.vmem [shape: f32[256,1], index: 13, kind: input, shape index: {}]
  %s14 = inlined_call_operand.<no memory space> [shape: f32[1,1], index: 14, kind: input, shape index: {}]
  %s15 = inlined_call_operand.<no memory space> [shape: f32[1,1], index: 15, kind: input, shape index: {}]
  %s16 = inlined_call_operand.<no memory space> [shape: f32[1,1], index: 16, kind: input, shape index: {}]
  %s17 = inlined_call_operand.vmem [shape: f32[2,1], index: 17, kind: output, shape index: {}]
  %s18 = sld [smem:[#allocation0]]
  $region94: #{tpu_custom_call.1} parent=0
    _
  %s20 = ssub.s32 1, %s18
  %s21 = scalar_select 0, %s20, %s18
  %v22 = vstv %s14
  %23 = vst [vmem:[#allocation2] sm:$0x1] %v22
  %v24 = vstv %s15
  %25 = vst [vmem:[#allocation3] sm:$0x1] %v24
  %v26 = vstv %s16
  %27 = vst [vmem:[#allocation4] sm:$0x1] %v26
  $region1: #{tpu_custom_call.1} parent=0
    #allocation5 [shape = 'u8[32768]{0}', space=vmem, size = 0x8000, scoped, tag = 'input window, operand 3, single buffered']
    #allocation6 [shape = 's32[1]{0}', space=sflag, size = 0x4, scoped, tag = 'scoped memory for tpu_custom_call.1']
    #allocation7 [shape = 'u8[32768]{0}', space=vmem, size = 0x8000, scoped, tag = 'input window, operand 5, single buffered']
    #allocation8 [shape = 's32[1]{0}', space=sflag, size = 0x4, scoped, tag = 'scoped memory for tpu_custom_call.1']
    #allocation9 [shape = 'u8[32768]{0}', space=vmem, size = 0x8000, scoped, tag = 'input window, operand 7, single buffered']
    #allocation10 [shape = 'u8[32768]{0}', space=vmem, size = 0x8000, scoped, tag = 'input window, operand 9, single buffered']
    #allocation11 [shape = 's32[1]{0}', space=sflag, size = 0x4, scoped, tag = 'scoped memory for tpu_custom_call.1']
    %28 = vsyncpa [#allocation6], 0
    %29 = vsyncpa [#allocation8], 0
    %30 = vsyncpa [#allocation11], 0
    // Predicated region
    $region2: #{tpu_custom_call.1} parent=1 // pred_check
      _
    $region3: #{tpu_custom_call.1} parent=1 // pred_check_branch
      %32 = sbr.rel (0) target = $region5
    $region4: #{tpu_custom_call.1} parent=1 // pred_region
      _
    $region5: #{tpu_custom_call.1} parent=1 // pred_fallthru
      _
    // Predicated region
    $region6: #{tpu_custom_call.1} parent=1 // pred_check
      _
    $region7: #{tpu_custom_call.1} parent=1 // pred_check_branch
      %34 = sbr.rel (0) target = $region9
    $region8: #{tpu_custom_call.1} parent=1 // pred_region
      _
    $region9: #{tpu_custom_call.1} parent=1 // pred_fallthru
      _
    // Predicated region
    $region10: #{tpu_custom_call.1} parent=1 // pred_check
      _
    $region11: #{tpu_custom_call.1} parent=1 // pred_check_branch
      %36 = sbr.rel (0) target = $region13
    $region12: #{tpu_custom_call.1} parent=1 // pred_region
      _
    $region13: #{tpu_custom_call.1} parent=1 // pred_fallthru
      _
    // Predicated region
    $region14: #{tpu_custom_call.1} parent=1 // pred_check
      _
    $region15: #{tpu_custom_call.1} parent=1 // pred_check_branch
      %38 = sbr.rel (0) target = $region17
    $region16: #{tpu_custom_call.1} parent=1 // pred_region
      %s40 = ssub.s32 1024, 1024
      %41 = vsyncadd [#allocation6], %s40
      %s42 = sshll.u32 [#allocation5], 4
      %s43 = int_to_ptr.vmem [resolvable:$true] %s42
      %48 = dma.hbm_to_vmem [thread:$0]  %s3, 1024, %s43, [#allocation6], 128, 128, 8
    $region17: #{tpu_custom_call.1} parent=1 // pred_fallthru
      _
    // Predicated region
    $region18: #{tpu_custom_call.1} parent=1 // pred_check
      _
    $region19: #{tpu_custom_call.1} parent=1 // pred_check_branch
      %50 = sbr.rel (0) target = $region21
    $region20: #{tpu_custom_call.1} parent=1 // pred_region
      _
    $region21: #{tpu_custom_call.1} parent=1 // pred_fallthru
      _
    // Predicated region
    $region22: #{tpu_custom_call.1} parent=1 // pred_check
      _
    $region23: #{tpu_custom_call.1} parent=1 // pred_check_branch
      %52 = sbr.rel (0) target = $region25
    $region24: #{tpu_custom_call.1} parent=1 // pred_region
      %s54 = ssub.s32 1024, 1024
      %55 = vsyncadd [#allocation8], %s54
      %s56 = sshll.u32 [#allocation7], 4
      %s57 = int_to_ptr.vmem [resolvable:$true] %s56
      %62 = dma.hbm_to_vmem [thread:$0]  %s5, 1024, %s57, [#allocation8], 128, 128, 8
    $region25: #{tpu_custom_call.1} parent=1 // pred_fallthru
      _
    // Predicated region
    $region26: #{tpu_custom_call.1} parent=1 // pred_check
      _
    $region27: #{tpu_custom_call.1} parent=1 // pred_check_branch
      %64 = sbr.rel (0) target = $region29
    $region28: #{tpu_custom_call.1} parent=1 // pred_region
      _
    $region29: #{tpu_custom_call.1} parent=1 // pred_fallthru
      _
    // Predicated region
    $region30: #{tpu_custom_call.1} parent=1 // pred_check
      _
    $region31: #{tpu_custom_call.1} parent=1 // pred_check_branch
      %66 = sbr.rel (0) target = $region33
    $region32: #{tpu_custom_call.1} parent=1 // pred_region
      %s68 = ssub.s32 1024, 1024
      %69 = vsyncadd [#allocation8], %s68
      %s70 = sshll.u32 [#allocation9], 4
      %s71 = int_to_ptr.vmem [resolvable:$true] %s70
      %76 = dma.hbm_to_vmem [thread:$0]  %s7, 1024, %s71, [#allocation8], 128, 128, 8
    $region33: #{tpu_custom_call.1} parent=1 // pred_fallthru
      _
    // Predicated region
    $region34: #{tpu_custom_call.1} parent=1 // pred_check
      _
    $region35: #{tpu_custom_call.1} parent=1 // pred_check_branch
      %78 = sbr.rel (0) target = $region37
    $region36: #{tpu_custom_call.1} parent=1 // pred_region
      _
    $region37: #{tpu_custom_call.1} parent=1 // pred_fallthru
      _
    // Predicated region
    $region38: #{tpu_custom_call.1} parent=1 // pred_check
      _
    $region39: #{tpu_custom_call.1} parent=1 // pred_check_branch
      %80 = sbr.rel (0) target = $region41
    $region40: #{tpu_custom_call.1} parent=1 // pred_region
      %s82 = ssub.s32 1024, 1024
      %83 = vsyncadd [#allocation11], %s82
      %s84 = sshll.u32 [#allocation10], 4
      %s85 = int_to_ptr.vmem [resolvable:$true] %s84
      %90 = dma.hbm_to_vmem [thread:$0]  %s9, 1024, %s85, [#allocation11], 128, 128, 8
    $region41: #{tpu_custom_call.1} parent=1 // pred_fallthru
      _
    // Predicated region
    $region42: #{tpu_custom_call.1} parent=1 // pred_check
      _
    $region43: #{tpu_custom_call.1} parent=1 // pred_check_branch
      %92 = sbr.rel (0) target = $region45
    $region44: #{tpu_custom_call.1} parent=1 // pred_region
      _
    $region45: #{tpu_custom_call.1} parent=1 // pred_fallthru
      _
    // Predicated region
    $region46: #{tpu_custom_call.1} parent=1 // pred_check
      _
    $region47: #{tpu_custom_call.1} parent=1 // pred_check_branch
      %94 = sbr.rel (0) target = $region49
    $region48: #{tpu_custom_call.1} parent=1 // pred_region
      _
    $region49: #{tpu_custom_call.1} parent=1 // pred_fallthru
      _
    // Predicated region
    $region50: #{tpu_custom_call.1} parent=1 // pred_check
      _
    $region51: #{tpu_custom_call.1} parent=1 // pred_check_branch
      %96 = sbr.rel (0) target = $region53
    $region52: #{tpu_custom_call.1} parent=1 // pred_region
      _
    $region53: #{tpu_custom_call.1} parent=1 // pred_fallthru
      _
    // Predicated region
    $region54: #{tpu_custom_call.1} parent=1 // pred_check
      _
    $region55: #{tpu_custom_call.1} parent=1 // pred_check_branch
      %98 = sbr.rel (0) target = $region57
    $region56: #{tpu_custom_call.1} parent=1 // pred_region
      _
    $region57: #{tpu_custom_call.1} parent=1 // pred_fallthru
      _
    // Predicated region
    $region58: #{tpu_custom_call.1} parent=1 // pred_check
      _
    $region59: #{tpu_custom_call.1} parent=1 // pred_check_branch
      %100 = sbr.rel (0) target = $region61
    $region60: #{tpu_custom_call.1} parent=1 // pred_region
      _
    $region61: #{tpu_custom_call.1} parent=1 // pred_fallthru
      _
    // Predicated region
    $region62: #{tpu_custom_call.1} parent=1 // pred_check
      _
    $region63: #{tpu_custom_call.1} parent=1 // pred_check_branch
      %102 = sbr.rel (0) target = $region65
    $region64: #{tpu_custom_call.1} parent=1 // pred_region
      _
    $region65: #{tpu_custom_call.1} parent=1 // pred_fallthru
      _
    // Predicated region
    $region66: #{tpu_custom_call.1} parent=1 // pred_check
      _
    $region67: #{tpu_custom_call.1} parent=1 // pred_check_branch
      %104 = sbr.rel (0) target = $region69
    $region68: #{tpu_custom_call.1} parent=1 // pred_region
      _
    $region69: #{tpu_custom_call.1} parent=1 // pred_fallthru
      _
    // Predicated region
    $region70: #{tpu_custom_call.1} parent=1 // pred_check
      _
    $region71: #{tpu_custom_call.1} parent=1 // pred_check_branch
      %106 = sbr.rel (0) target = $region73
    $region72: #{tpu_custom_call.1} parent=1 // pred_region
      %107 = dma.done [#allocation6], 1024
    $region73: #{tpu_custom_call.1} parent=1 // pred_fallthru
      _
    // Predicated region
    $region74: #{tpu_custom_call.1} parent=1 // pred_check
      _
    $region75: #{tpu_custom_call.1} parent=1 // pred_check_branch
      %109 = sbr.rel (0) target = $region77
    $region76: #{tpu_custom_call.1} parent=1 // pred_region
      %110 = dma.done [#allocation8], 1024
    $region77: #{tpu_custom_call.1} parent=1 // pred_fallthru
      _
    // Predicated region
    $region78: #{tpu_custom_call.1} parent=1 // pred_check
      _
    $region79: #{tpu_custom_call.1} parent=1 // pred_check_branch
      %112 = sbr.rel (0) target = $region81
    $region80: #{tpu_custom_call.1} parent=1 // pred_region
      %113 = dma.done [#allocation8], 1024
    $region81: #{tpu_custom_call.1} parent=1 // pred_fallthru
      _
    // Predicated region
    $region82: #{tpu_custom_call.1} parent=1 // pred_check
      _
    $region83: #{tpu_custom_call.1} parent=1 // pred_check_branch
      %115 = sbr.rel (0) target = $region85
    $region84: #{tpu_custom_call.1} parent=1 // pred_region
      %116 = dma.done [#allocation11], 1024
    $region85: #{tpu_custom_call.1} parent=1 // pred_fallthru
      _
    %v117 = vld [vmem:[%s0] sm:$0x3]
    %v118 = vld [vmem:[%s1] sm:$0xff]
    %v119 = vld [vmem:[%s1 + $0x8] sm:$0xff]
    %v120 = vld [vmem:[%s1 + $0x10] sm:$0xff]
    %v121 = vld [vmem:[%s1 + $0x18] sm:$0xff]
    %v122 = vld [vmem:[%s2] sm:$0x1]
    %v124 = vlaneseq
    %v125 = vshrl.u32 %v124, 7
    %v126 = vsub.s32 0, %v125
    %v127 = vrot.slane %v122, %v126
    %vm129 = vcmask 261120
    %v131 = vsel %vm129, %v117, 0
    %133 = vmatprep.subr.mxu0 0.0
    %134 = vmatpush1.msra.mxu0 %v118
    %135 = vmatprep.subr.mxu0 0.0
    %136 = vmatpush1.msra.mxu0 %v119
    %137 = vmatprep.subr.mxu0 0.0
    %138 = vmatpush1.msra.mxu0 %v120
    %139 = vmatprep.subr.mxu0 0.0
    %140 = vmatpush1.msra.mxu0 %v121
    %141 = vmatprep.subr.mxu0 0.0
    %142 = vmatpush1.msra.mxu0 0.0
    %143 = vmatprep.subr.mxu0 0.0
    %144 = vmatpush1.msra.mxu0 0.0
    %145 = vmatprep.subr.mxu0 0.0
    %146 = vmatpush1.msra.mxu0 0.0
    %147 = vmatprep.subr.mxu0 0.0
    %148 = vmatpush1.msra.mxu0 0.0
    %149 = vmatprep.subr.mxu0 0.0
    %150 = vmatpush1.msra.mxu0 0.0
    %151 = vmatprep.subr.mxu0 0.0
    %152 = vmatpush1.msra.mxu0 0.0
    %153 = vmatprep.subr.mxu0 0.0
    %154 = vmatpush1.msra.mxu0 0.0
    %155 = vmatprep.subr.mxu0 0.0
    %156 = vmatpush1.msra.mxu0 0.0
    %157 = vmatprep.subr.mxu0 0.0
    %158 = vmatpush1.msra.mxu0 0.0
    %159 = vmatprep.subr.mxu0 0.0
    %160 = vmatpush1.msra.mxu0 0.0
    %161 = vmatprep.subr.mxu0 0.0
    %162 = vmatpush1.msra.mxu0 0.0
    %163 = vmatprep.subr.mxu0 0.0
    %164 = vmatpush1.msra.mxu0 0.0
    %165 = vmatprep.subr.mxu0 0.0
    %166 = vmatpush1.msra.mxu0 0.0
    %167 = vmatprep.subr.mxu0 0.0
    %168 = vmatpush1.msra.mxu0 0.0
    %169 = vmatprep.subr.mxu0 0.0
    %170 = vmatpush1.msra.mxu0 0.0
    %171 = vmatprep.subr.mxu0 0.0
    %172 = vmatpush1.msra.mxu0 0.0
    %173 = vmatprep.subr.mxu0 0.0
    %174 = vmatpush1.msra.mxu0 0.0
    %175 = vmatprep.subr.mxu0 0.0
    %176 = vmatpush1.msra.mxu0 0.0
    %177 = vmatprep.subr.mxu0 0.0
    %178 = vmatpush1.msra.mxu0 0.0
    %179 = vmatprep.subr.mxu0 0.0
    %180 = vmatpush1.msra.mxu0 0.0
    %181 = vmatprep.subr.mxu0 0.0
    %182 = vmatpush1.msra.mxu0 0.0
    %183 = vmatprep.subr.mxu0 0.0
    %184 = vmatpush1.msra.mxu0 0.0
    %185 = vmatprep.subr.mxu0 0.0
    %186 = vmatpush1.msra.mxu0 0.0
    %187 = vmatprep.subr.mxu0 0.0
    %188 = vmatpush1.msra.mxu0 0.0
    %189 = vmatprep.subr.mxu0 0.0
    %190 = vmatpush1.msra.mxu0 0.0
    %191 = vmatprep.subr.mxu0 0.0
    %192 = vmatpush1.msra.mxu0 0.0
    %193 = vmatprep.subr.mxu0 0.0
    %194 = vmatpush1.msra.mxu0 0.0
    %195 = vmatprep.subr.mxu0 0.0
    %196 = vmatpush1.msra.mxu0 0.0
    %197 = vmatprep.mubr.f32.mxu0 0.0
    %198 = vmatmul.mubr.f32.gmra.mrb[0].mxu0 %v131
    %v199 = vpop.f32.mrb[0].mxu0
    %v200 = vadd.f32 %v127, %v199
    %v201 = vpop.f32.mrb[0].mxu0
    %202 = vdwg.mxu0
    %vm203 = vcmp.ge.f32.partialorder %v200, 0.0
    %v204 = vmul.f32 %v200, 0.2
    %v205 = vsel %vm203, %v200, %v204
    %v206 = vld [vmem:[#allocation5] sm:$0xff]
    %v207 = vld [vmem:[#allocation5 + $0x8] sm:$0xff]
    %v208 = vld [vmem:[#allocation5 + $0x10] sm:$0xff]
    %v209 = vld [vmem:[#allocation5 + $0x18] sm:$0xff]
    %v210 = vld [vmem:[#allocation5 + $0x20] sm:$0xff]
    %v211 = vld [vmem:[#allocation5 + $0x28] sm:$0xff]
    %v212 = vld [vmem:[#allocation5 + $0x30] sm:$0xff]
    %v213 = vld [vmem:[#allocation5 + $0x38] sm:$0xff]
    %v214 = vld [vmem:[%s4] sm:$0x1]
    %v216 = vlaneseq
    %v217 = vshrl.u32 %v216, 7
    %v218 = vsub.s32 0, %v217
    %v219 = vrot.slane %v214, %v218
    %vm221 = vcmask 523264
    %v223 = vsel %vm221, %v205, 0
    %225 = vmatprep.subr.mxu0 0.0
    %226 = vmatpush1.msra.mxu0 %v206
    %227 = vmatprep.subr.mxu0 0.0
    %228 = vmatpush1.msra.mxu0 %v207
    %229 = vmatprep.subr.mxu0 0.0
    %230 = vmatpush1.msra.mxu0 %v208
    %231 = vmatprep.subr.mxu0 0.0
    %232 = vmatpush1.msra.mxu0 %v209
    %233 = vmatprep.subr.mxu0 0.0
    %234 = vmatpush1.msra.mxu0 %v210
    %235 = vmatprep.subr.mxu0 0.0
    %236 = vmatpush1.msra.mxu0 %v211
    %237 = vmatprep.subr.mxu0 0.0
    %238 = vmatpush1.msra.mxu0 %v212
    %239 = vmatprep.subr.mxu0 0.0
    %240 = vmatpush1.msra.mxu0 %v213
    %241 = vmatprep.subr.mxu0 0.0
    %242 = vmatpush1.msra.mxu0 0.0
    %243 = vmatprep.subr.mxu0 0.0
    %244 = vmatpush1.msra.mxu0 0.0
    %245 = vmatprep.subr.mxu0 0.0
    %246 = vmatpush1.msra.mxu0 0.0
    %247 = vmatprep.subr.mxu0 0.0
    %248 = vmatpush1.msra.mxu0 0.0
    %249 = vmatprep.subr.mxu0 0.0
    %250 = vmatpush1.msra.mxu0 0.0
    %251 = vmatprep.subr.mxu0 0.0
    %252 = vmatpush1.msra.mxu0 0.0
    %253 = vmatprep.subr.mxu0 0.0
    %254 = vmatpush1.msra.mxu0 0.0
    %255 = vmatprep.subr.mxu0 0.0
    %256 = vmatpush1.msra.mxu0 0.0
    %257 = vmatprep.subr.mxu0 0.0
    %258 = vmatpush1.msra.mxu0 0.0
    %259 = vmatprep.subr.mxu0 0.0
    %260 = vmatpush1.msra.mxu0 0.0
    %261 = vmatprep.subr.mxu0 0.0
    %262 = vmatpush1.msra.mxu0 0.0
    %263 = vmatprep.subr.mxu0 0.0
    %264 = vmatpush1.msra.mxu0 0.0
    %265 = vmatprep.subr.mxu0 0.0
    %266 = vmatpush1.msra.mxu0 0.0
    %267 = vmatprep.subr.mxu0 0.0
    %268 = vmatpush1.msra.mxu0 0.0
    %269 = vmatprep.subr.mxu0 0.0
    %270 = vmatpush1.msra.mxu0 0.0
    %271 = vmatprep.subr.mxu0 0.0
    %272 = vmatpush1.msra.mxu0 0.0
    %273 = vmatprep.subr.mxu0 0.0
    %274 = vmatpush1.msra.mxu0 0.0
    %275 = vmatprep.subr.mxu0 0.0
    %276 = vmatpush1.msra.mxu0 0.0
    %277 = vmatprep.subr.mxu0 0.0
    %278 = vmatpush1.msra.mxu0 0.0
    %279 = vmatprep.subr.mxu0 0.0
    %280 = vmatpush1.msra.mxu0 0.0
    %281 = vmatprep.subr.mxu0 0.0
    %282 = vmatpush1.msra.mxu0 0.0
    %283 = vmatprep.subr.mxu0 0.0
    %284 = vmatpush1.msra.mxu0 0.0
    %285 = vmatprep.subr.mxu0 0.0
    %286 = vmatpush1.msra.mxu0 0.0
    %287 = vmatprep.subr.mxu0 0.0
    %288 = vmatpush1.msra.mxu0 0.0
    %289 = vmatprep.mubr.f32.mxu0 0.0
    %290 = vmatmul.mubr.f32.gmra.mrb[0].mxu0 %v223
    %v291 = vpop.f32.mrb[0].mxu0
    %v292 = vadd.f32 %v219, %v291
    %v293 = vpop.f32.mrb[0].mxu0
    %294 = vdwg.mxu0
    %vm295 = vcmp.ge.f32.partialorder %v292, 0.0
    %v296 = vmul.f32 %v292, 0.2
    %v297 = vsel %vm295, %v292, %v296
    %v298 = vld [vmem:[#allocation7] sm:$0xff]
    %v299 = vld [vmem:[#allocation7 + $0x8] sm:$0xff]
    %v300 = vld [vmem:[#allocation7 + $0x10] sm:$0xff]
    %v301 = vld [vmem:[#allocation7 + $0x18] sm:$0xff]
    %v302 = vld [vmem:[#allocation7 + $0x20] sm:$0xff]
    %v303 = vld [vmem:[#allocation7 + $0x28] sm:$0xff]
    %v304 = vld [vmem:[#allocation7 + $0x30] sm:$0xff]
    %v305 = vld [vmem:[#allocation7 + $0x38] sm:$0xff]
    %v306 = vld [vmem:[%s6] sm:$0x1]
    %v308 = vlaneseq
    %v309 = vshrl.u32 %v308, 7
    %v310 = vsub.s32 0, %v309
    %v311 = vrot.slane %v306, %v310
    %v314 = vsel %vm221, %v297, 0
    %316 = vmatprep.subr.mxu0 0.0
    %317 = vmatpush1.msra.mxu0 %v298
    %318 = vmatprep.subr.mxu0 0.0
    %319 = vmatpush1.msra.mxu0 %v299
    %320 = vmatprep.subr.mxu0 0.0
    %321 = vmatpush1.msra.mxu0 %v300
    %322 = vmatprep.subr.mxu0 0.0
    %323 = vmatpush1.msra.mxu0 %v301
    %324 = vmatprep.subr.mxu0 0.0
    %325 = vmatpush1.msra.mxu0 %v302
    %326 = vmatprep.subr.mxu0 0.0
    %327 = vmatpush1.msra.mxu0 %v303
    %328 = vmatprep.subr.mxu0 0.0
    %329 = vmatpush1.msra.mxu0 %v304
    %330 = vmatprep.subr.mxu0 0.0
    %331 = vmatpush1.msra.mxu0 %v305
    %332 = vmatprep.subr.mxu0 0.0
    %333 = vmatpush1.msra.mxu0 0.0
    %334 = vmatprep.subr.mxu0 0.0
    %335 = vmatpush1.msra.mxu0 0.0
    %336 = vmatprep.subr.mxu0 0.0
    %337 = vmatpush1.msra.mxu0 0.0
    %338 = vmatprep.subr.mxu0 0.0
    %339 = vmatpush1.msra.mxu0 0.0
    %340 = vmatprep.subr.mxu0 0.0
    %341 = vmatpush1.msra.mxu0 0.0
    %342 = vmatprep.subr.mxu0 0.0
    %343 = vmatpush1.msra.mxu0 0.0
    %344 = vmatprep.subr.mxu0 0.0
    %345 = vmatpush1.msra.mxu0 0.0
    %346 = vmatprep.subr.mxu0 0.0
    %347 = vmatpush1.msra.mxu0 0.0
    %348 = vmatprep.subr.mxu0 0.0
    %349 = vmatpush1.msra.mxu0 0.0
    %350 = vmatprep.subr.mxu0 0.0
    %351 = vmatpush1.msra.mxu0 0.0
    %352 = vmatprep.subr.mxu0 0.0
    %353 = vmatpush1.msra.mxu0 0.0
    %354 = vmatprep.subr.mxu0 0.0
    %355 = vmatpush1.msra.mxu0 0.0
    %356 = vmatprep.subr.mxu0 0.0
    %357 = vmatpush1.msra.mxu0 0.0
    %358 = vmatprep.subr.mxu0 0.0
    %359 = vmatpush1.msra.mxu0 0.0
    %360 = vmatprep.subr.mxu0 0.0
    %361 = vmatpush1.msra.mxu0 0.0
    %362 = vmatprep.subr.mxu0 0.0
    %363 = vmatpush1.msra.mxu0 0.0
    %364 = vmatprep.subr.mxu0 0.0
    %365 = vmatpush1.msra.mxu0 0.0
    %366 = vmatprep.subr.mxu0 0.0
    %367 = vmatpush1.msra.mxu0 0.0
    %368 = vmatprep.subr.mxu0 0.0
    %369 = vmatpush1.msra.mxu0 0.0
    %370 = vmatprep.subr.mxu0 0.0
    %371 = vmatpush1.msra.mxu0 0.0
    %372 = vmatprep.subr.mxu0 0.0
    %373 = vmatpush1.msra.mxu0 0.0
    %374 = vmatprep.subr.mxu0 0.0
    %375 = vmatpush1.msra.mxu0 0.0
    %376 = vmatprep.subr.mxu0 0.0
    %377 = vmatpush1.msra.mxu0 0.0
    %378 = vmatprep.subr.mxu0 0.0
    %379 = vmatpush1.msra.mxu0 0.0
    %380 = vmatprep.mubr.f32.mxu0 0.0
    %381 = vmatmul.mubr.f32.gmra.mrb[0].mxu0 %v314
    %v382 = vpop.f32.mrb[0].mxu0
    %v383 = vadd.f32 %v311, %v382
    %v384 = vpop.f32.mrb[0].mxu0
    %385 = vdwg.mxu0
    %vm386 = vcmp.ge.f32.partialorder %v383, 0.0
    %v387 = vmul.f32 %v383, 0.2
    %v388 = vsel %vm386, %v383, %v387
    %v389 = vld [vmem:[#allocation9] sm:$0xff]
    %v390 = vld [vmem:[#allocation9 + $0x8] sm:$0xff]
    %v391 = vld [vmem:[#allocation9 + $0x10] sm:$0xff]
    %v392 = vld [vmem:[#allocation9 + $0x18] sm:$0xff]
    %v393 = vld [vmem:[#allocation9 + $0x20] sm:$0xff]
    %v394 = vld [vmem:[#allocation9 + $0x28] sm:$0xff]
    %v395 = vld [vmem:[#allocation9 + $0x30] sm:$0xff]
    %v396 = vld [vmem:[#allocation9 + $0x38] sm:$0xff]
    %v397 = vld [vmem:[%s8] sm:$0x1]
    %v399 = vlaneseq
    %v400 = vshrl.u32 %v399, 7
    %v401 = vsub.s32 0, %v400
    %v402 = vrot.slane %v397, %v401
    %v405 = vsel %vm221, %v388, 0
    %407 = vmatprep.subr.mxu0 0.0
    %408 = vmatpush1.msra.mxu0 %v389
    %409 = vmatprep.subr.mxu0 0.0
    %410 = vmatpush1.msra.mxu0 %v390
    %411 = vmatprep.subr.mxu0 0.0
    %412 = vmatpush1.msra.mxu0 %v391
    %413 = vmatprep.subr.mxu0 0.0
    %414 = vmatpush1.msra.mxu0 %v392
    %415 = vmatprep.subr.mxu0 0.0
    %416 = vmatpush1.msra.mxu0 %v393
    %417 = vmatprep.subr.mxu0 0.0
    %418 = vmatpush1.msra.mxu0 %v394
    %419 = vmatprep.subr.mxu0 0.0
    %420 = vmatpush1.msra.mxu0 %v395
    %421 = vmatprep.subr.mxu0 0.0
    %422 = vmatpush1.msra.mxu0 %v396
    %423 = vmatprep.subr.mxu0 0.0
    %424 = vmatpush1.msra.mxu0 0.0
    %425 = vmatprep.subr.mxu0 0.0
    %426 = vmatpush1.msra.mxu0 0.0
    %427 = vmatprep.subr.mxu0 0.0
    %428 = vmatpush1.msra.mxu0 0.0
    %429 = vmatprep.subr.mxu0 0.0
    %430 = vmatpush1.msra.mxu0 0.0
    %431 = vmatprep.subr.mxu0 0.0
    %432 = vmatpush1.msra.mxu0 0.0
    %433 = vmatprep.subr.mxu0 0.0
    %434 = vmatpush1.msra.mxu0 0.0
    %435 = vmatprep.subr.mxu0 0.0
    %436 = vmatpush1.msra.mxu0 0.0
    %437 = vmatprep.subr.mxu0 0.0
    %438 = vmatpush1.msra.mxu0 0.0
    %439 = vmatprep.subr.mxu0 0.0
    %440 = vmatpush1.msra.mxu0 0.0
    %441 = vmatprep.subr.mxu0 0.0
    %442 = vmatpush1.msra.mxu0 0.0
    %443 = vmatprep.subr.mxu0 0.0
    %444 = vmatpush1.msra.mxu0 0.0
    %445 = vmatprep.subr.mxu0 0.0
    %446 = vmatpush1.msra.mxu0 0.0
    %447 = vmatprep.subr.mxu0 0.0
    %448 = vmatpush1.msra.mxu0 0.0
    %449 = vmatprep.subr.mxu0 0.0
    %450 = vmatpush1.msra.mxu0 0.0
    %451 = vmatprep.subr.mxu0 0.0
    %452 = vmatpush1.msra.mxu0 0.0
    %453 = vmatprep.subr.mxu0 0.0
    %454 = vmatpush1.msra.mxu0 0.0
    %455 = vmatprep.subr.mxu0 0.0
    %456 = vmatpush1.msra.mxu0 0.0
    %457 = vmatprep.subr.mxu0 0.0
    %458 = vmatpush1.msra.mxu0 0.0
    %459 = vmatprep.subr.mxu0 0.0
    %460 = vmatpush1.msra.mxu0 0.0
    %461 = vmatprep.subr.mxu0 0.0
    %462 = vmatpush1.msra.mxu0 0.0
    %463 = vmatprep.subr.mxu0 0.0
    %464 = vmatpush1.msra.mxu0 0.0
    %465 = vmatprep.subr.mxu0 0.0
    %466 = vmatpush1.msra.mxu0 0.0
    %467 = vmatprep.subr.mxu0 0.0
    %468 = vmatpush1.msra.mxu0 0.0
    %469 = vmatprep.subr.mxu0 0.0
    %470 = vmatpush1.msra.mxu0 0.0
    %471 = vmatprep.mubr.f32.mxu0 0.0
    %472 = vmatmul.mubr.f32.gmra.mrb[0].mxu0 %v405
    %v473 = vpop.f32.mrb[0].mxu0
    %v474 = vadd.f32 %v402, %v473
    %v475 = vpop.f32.mrb[0].mxu0
    %476 = vdwg.mxu0
    %vm477 = vcmp.ge.f32.partialorder %v474, 0.0
    %v478 = vmul.f32 %v474, 0.2
    %v479 = vsel %vm477, %v474, %v478
    %v480 = vld [vmem:[#allocation10] sm:$0xff]
    %v481 = vld [vmem:[#allocation10 + $0x8] sm:$0xff]
    %v482 = vld [vmem:[#allocation10 + $0x10] sm:$0xff]
    %v483 = vld [vmem:[#allocation10 + $0x18] sm:$0xff]
    %v484 = vld [vmem:[#allocation10 + $0x20] sm:$0xff]
    %v485 = vld [vmem:[#allocation10 + $0x28] sm:$0xff]
    %v486 = vld [vmem:[#allocation10 + $0x30] sm:$0xff]
    %v487 = vld [vmem:[#allocation10 + $0x38] sm:$0xff]
    %v488 = vld [vmem:[%s10] sm:$0x1]
    %v490 = vlaneseq
    %v491 = vshrl.u32 %v490, 7
    %v492 = vsub.s32 0, %v491
    %v493 = vrot.slane %v488, %v492
    %v496 = vsel %vm221, %v479, 0
    %498 = vmatprep.subr.mxu0 0.0
    %499 = vmatpush1.msra.mxu0 %v480
    %500 = vmatprep.subr.mxu0 0.0
    %501 = vmatpush1.msra.mxu0 %v481
    %502 = vmatprep.subr.mxu0 0.0
    %503 = vmatpush1.msra.mxu0 %v482
    %504 = vmatprep.subr.mxu0 0.0
    %505 = vmatpush1.msra.mxu0 %v483
    %506 = vmatprep.subr.mxu0 0.0
    %507 = vmatpush1.msra.mxu0 %v484
    %508 = vmatprep.subr.mxu0 0.0
    %509 = vmatpush1.msra.mxu0 %v485
    %510 = vmatprep.subr.mxu0 0.0
    %511 = vmatpush1.msra.mxu0 %v486
    %512 = vmatprep.subr.mxu0 0.0
    %513 = vmatpush1.msra.mxu0 %v487
    %514 = vmatprep.subr.mxu0 0.0
    %515 = vmatpush1.msra.mxu0 0.0
    %516 = vmatprep.subr.mxu0 0.0
    %517 = vmatpush1.msra.mxu0 0.0
    %518 = vmatprep.subr.mxu0 0.0
    %519 = vmatpush1.msra.mxu0 0.0
    %520 = vmatprep.subr.mxu0 0.0
    %521 = vmatpush1.msra.mxu0 0.0
    %522 = vmatprep.subr.mxu0 0.0
    %523 = vmatpush1.msra.mxu0 0.0
    %524 = vmatprep.subr.mxu0 0.0
    %525 = vmatpush1.msra.mxu0 0.0
    %526 = vmatprep.subr.mxu0 0.0
    %527 = vmatpush1.msra.mxu0 0.0
    %528 = vmatprep.subr.mxu0 0.0
    %529 = vmatpush1.msra.mxu0 0.0
    %530 = vmatprep.subr.mxu0 0.0
    %531 = vmatpush1.msra.mxu0 0.0
    %532 = vmatprep.subr.mxu0 0.0
    %533 = vmatpush1.msra.mxu0 0.0
    %534 = vmatprep.subr.mxu0 0.0
    %535 = vmatpush1.msra.mxu0 0.0
    %536 = vmatprep.subr.mxu0 0.0
    %537 = vmatpush1.msra.mxu0 0.0
    %538 = vmatprep.subr.mxu0 0.0
    %539 = vmatpush1.msra.mxu0 0.0
    %540 = vmatprep.subr.mxu0 0.0
    %541 = vmatpush1.msra.mxu0 0.0
    %542 = vmatprep.subr.mxu0 0.0
    %543 = vmatpush1.msra.mxu0 0.0
    %544 = vmatprep.subr.mxu0 0.0
    %545 = vmatpush1.msra.mxu0 0.0
    %546 = vmatprep.subr.mxu0 0.0
    %547 = vmatpush1.msra.mxu0 0.0
    %548 = vmatprep.subr.mxu0 0.0
    %549 = vmatpush1.msra.mxu0 0.0
    %550 = vmatprep.subr.mxu0 0.0
    %551 = vmatpush1.msra.mxu0 0.0
    %552 = vmatprep.subr.mxu0 0.0
    %553 = vmatpush1.msra.mxu0 0.0
    %554 = vmatprep.subr.mxu0 0.0
    %555 = vmatpush1.msra.mxu0 0.0
    %556 = vmatprep.subr.mxu0 0.0
    %557 = vmatpush1.msra.mxu0 0.0
    %558 = vmatprep.subr.mxu0 0.0
    %559 = vmatpush1.msra.mxu0 0.0
    %560 = vmatprep.subr.mxu0 0.0
    %561 = vmatpush1.msra.mxu0 0.0
    %562 = vmatprep.mubr.f32.mxu0 0.0
    %563 = vmatmul.mubr.f32.gmra.mrb[0].mxu0 %v496
    %v564 = vpop.f32.mrb[0].mxu0
    %v565 = vadd.f32 %v493, %v564
    %v566 = vpop.f32.mrb[0].mxu0
    %567 = vdwg.mxu0
    %vm568 = vcmp.ge.f32.partialorder %v565, 0.0
    %v569 = vmul.f32 %v565, 0.2
    %v570 = vsel %vm568, %v565, %v569
    %v571 = vld [vmem:[%s11] sm:$0xff]
    %v572 = vld [vmem:[%s11 + $0x8] sm:$0xff]
    %v573 = vld [vmem:[%s11 + $0x10] sm:$0xff]
    %v574 = vld [vmem:[%s11 + $0x18] sm:$0xff]
    %v575 = vld [vmem:[%s11 + $0x20] sm:$0xff]
    %v576 = vld [vmem:[%s11 + $0x28] sm:$0xff]
    %v577 = vld [vmem:[%s11 + $0x30] sm:$0xff]
    %v578 = vld [vmem:[%s11 + $0x38] sm:$0xff]
    %v579 = vld [vmem:[%s11 + $0x40] sm:$0xff]
    %v580 = vld [vmem:[%s11 + $0x48] sm:$0xff]
    %v581 = vld [vmem:[%s11 + $0x50] sm:$0xff]
    %v582 = vld [vmem:[%s11 + $0x58] sm:$0xff]
    %v583 = vld [vmem:[%s11 + $0x60] sm:$0xff]
    %v584 = vld [vmem:[%s11 + $0x68] sm:$0xff]
    %v585 = vld [vmem:[%s11 + $0x70] sm:$0xff]
    %v586 = vld [vmem:[%s11 + $0x78] sm:$0xff]
    %v587 = vld [vmem:[%s11 + $0x80] sm:$0xff]
    %v588 = vld [vmem:[%s11 + $0x88] sm:$0xff]
    %v589 = vld [vmem:[%s11 + $0x90] sm:$0xff]
    %v590 = vld [vmem:[%s11 + $0x98] sm:$0xff]
    %v591 = vld [vmem:[%s11 + $0xa0] sm:$0xff]
    %v592 = vld [vmem:[%s11 + $0xa8] sm:$0xff]
    %v593 = vld [vmem:[%s11 + $0xb0] sm:$0xff]
    %v594 = vld [vmem:[%s11 + $0xb8] sm:$0xff]
    %v595 = vld [vmem:[%s11 + $0xc0] sm:$0xff]
    %v596 = vld [vmem:[%s11 + $0xc8] sm:$0xff]
    %v597 = vld [vmem:[%s11 + $0xd0] sm:$0xff]
    %v598 = vld [vmem:[%s11 + $0xd8] sm:$0xff]
    %v599 = vld [vmem:[%s11 + $0xe0] sm:$0xff]
    %v600 = vld [vmem:[%s11 + $0xe8] sm:$0xff]
    %v601 = vld [vmem:[%s11 + $0xf0] sm:$0xff]
    %v602 = vld [vmem:[%s11 + $0xf8] sm:$0xff]
    %v603 = vld [vmem:[%s12] sm:$0x3]
    %v605 = vlaneseq
    %v606 = vshrl.u32 %v605, 7
    %v607 = vsub.s32 0, %v606
    %v608 = vrot.slane %v603, %v607
    %v609 = vlaneseq
    %v610 = vshrl.u32 %v609, 7
    %v611 = vsub.s32 1, %v610
    %v612 = vrot.slane %v603, %v611
    %615 = vmatprep.subr.mxu0 %v572
    %616 = vmatpush1.msra.mxu0 %v571
    %617 = vmatprep.subr.mxu0 %v574
    %618 = vmatpush1.msra.mxu0 %v573
    %619 = vmatprep.subr.mxu0 %v576
    %620 = vmatpush1.msra.mxu0 %v575
    %621 = vmatprep.subr.mxu0 %v578
    %622 = vmatpush1.msra.mxu0 %v577
    %623 = vmatprep.subr.mxu0 %v580
    %624 = vmatpush1.msra.mxu0 %v579
    %625 = vmatprep.subr.mxu0 %v582
    %626 = vmatpush1.msra.mxu0 %v581
    %627 = vmatprep.subr.mxu0 %v584
    %628 = vmatpush1.msra.mxu0 %v583
    %629 = vmatprep.subr.mxu0 %v586
    %630 = vmatpush1.msra.mxu0 %v585
    %631 = vmatprep.subr.mxu0 %v588
    %632 = vmatpush1.msra.mxu0 %v587
    %633 = vmatprep.subr.mxu0 %v590
    %634 = vmatpush1.msra.mxu0 %v589
    %635 = vmatprep.subr.mxu0 %v592
    %636 = vmatpush1.msra.mxu0 %v591
    %637 = vmatprep.subr.mxu0 %v594
    %638 = vmatpush1.msra.mxu0 %v593
    %639 = vmatprep.subr.mxu0 %v596
    %640 = vmatpush1.msra.mxu0 %v595
    %641 = vmatprep.subr.mxu0 %v598
    %642 = vmatpush1.msra.mxu0 %v597
    %643 = vmatprep.subr.mxu0 %v600
    %644 = vmatpush1.msra.mxu0 %v599
    %645 = vmatprep.subr.mxu0 %v602
    %646 = vmatpush1.msra.mxu0 %v601
    %647 = vmatprep.subr.mxu0 0.0
    %648 = vmatpush1.msra.mxu0 0.0
    %649 = vmatprep.subr.mxu0 0.0
    %650 = vmatpush1.msra.mxu0 0.0
    %651 = vmatprep.subr.mxu0 0.0
    %652 = vmatpush1.msra.mxu0 0.0
    %653 = vmatprep.subr.mxu0 0.0
    %654 = vmatpush1.msra.mxu0 0.0
    %655 = vmatprep.subr.mxu0 0.0
    %656 = vmatpush1.msra.mxu0 0.0
    %657 = vmatprep.subr.mxu0 0.0
    %658 = vmatpush1.msra.mxu0 0.0
    %659 = vmatprep.subr.mxu0 0.0
    %660 = vmatpush1.msra.mxu0 0.0
    %661 = vmatprep.subr.mxu0 0.0
    %662 = vmatpush1.msra.mxu0 0.0
    %663 = vmatprep.subr.mxu0 0.0
    %664 = vmatpush1.msra.mxu0 0.0
    %665 = vmatprep.subr.mxu0 0.0
    %666 = vmatpush1.msra.mxu0 0.0
    %667 = vmatprep.subr.mxu0 0.0
    %668 = vmatpush1.msra.mxu0 0.0
    %669 = vmatprep.subr.mxu0 0.0
    %670 = vmatpush1.msra.mxu0 0.0
    %671 = vmatprep.subr.mxu0 0.0
    %672 = vmatpush1.msra.mxu0 0.0
    %673 = vmatprep.subr.mxu0 0.0
    %674 = vmatpush1.msra.mxu0 0.0
    %675 = vmatprep.subr.mxu0 0.0
    %676 = vmatpush1.msra.mxu0 0.0
    %677 = vmatprep.subr.mxu0 0.0
    %678 = vmatpush1.msra.mxu0 0.0
    %679 = vmatprep.mubr.f32.mxu0 0.0
    %680 = vmatmul.mubr.f32.gmra.mrb[0].mxu0 %v570
    %v681 = vpop.f32.mrb[0].mxu0
    %v682 = vadd.f32 %v608, %v681
    %v683 = vpop.f32.mrb[0].mxu0
    %v684 = vadd.f32 %v612, %v683
    %685 = vdwg.mxu0
    %vm686 = vcmp.ge.f32.partialorder %v682, 0.0
    %vm687 = vcmp.ge.f32.partialorder %v684, 0.0
    %v688 = vmul.f32 %v682, 0.2
    %v689 = vmul.f32 %v684, 0.2
    %v690 = vsel %vm686, %v682, %v688
    %v691 = vsel %vm687, %v684, %v689
    %v692 = vld [vmem:[%s13] sm:$0xff]
    %v693 = vld [vmem:[%s13 + $0x8] sm:$0xff]
    %v694 = vld [vmem:[%s13 + $0x10] sm:$0xff]
    %v695 = vld [vmem:[%s13 + $0x18] sm:$0xff]
    %v696 = vld [vmem:[%s13 + $0x20] sm:$0xff]
    %v697 = vld [vmem:[%s13 + $0x28] sm:$0xff]
    %v698 = vld [vmem:[%s13 + $0x30] sm:$0xff]
    %v699 = vld [vmem:[%s13 + $0x38] sm:$0xff]
    %v700 = vld [vmem:[%s13 + $0x40] sm:$0xff]
    %v701 = vld [vmem:[%s13 + $0x48] sm:$0xff]
    %v702 = vld [vmem:[%s13 + $0x50] sm:$0xff]
    %v703 = vld [vmem:[%s13 + $0x58] sm:$0xff]
    %v704 = vld [vmem:[%s13 + $0x60] sm:$0xff]
    %v705 = vld [vmem:[%s13 + $0x68] sm:$0xff]
    %v706 = vld [vmem:[%s13 + $0x70] sm:$0xff]
    %v707 = vld [vmem:[%s13 + $0x78] sm:$0xff]
    %v708 = vld [vmem:[%s13 + $0x80] sm:$0xff]
    %v709 = vld [vmem:[%s13 + $0x88] sm:$0xff]
    %v710 = vld [vmem:[%s13 + $0x90] sm:$0xff]
    %v711 = vld [vmem:[%s13 + $0x98] sm:$0xff]
    %v712 = vld [vmem:[%s13 + $0xa0] sm:$0xff]
    %v713 = vld [vmem:[%s13 + $0xa8] sm:$0xff]
    %v714 = vld [vmem:[%s13 + $0xb0] sm:$0xff]
    %v715 = vld [vmem:[%s13 + $0xb8] sm:$0xff]
    %v716 = vld [vmem:[%s13 + $0xc0] sm:$0xff]
    %v717 = vld [vmem:[%s13 + $0xc8] sm:$0xff]
    %v718 = vld [vmem:[%s13 + $0xd0] sm:$0xff]
    %v719 = vld [vmem:[%s13 + $0xd8] sm:$0xff]
    %v720 = vld [vmem:[%s13 + $0xe0] sm:$0xff]
    %v721 = vld [vmem:[%s13 + $0xe8] sm:$0xff]
    %v722 = vld [vmem:[%s13 + $0xf0] sm:$0xff]
    %v723 = vld [vmem:[%s13 + $0xf8] sm:$0xff]
    %v724 = vld [vmem:[#allocation2] sm:$0x1]
    %v726 = vlaneseq
    %v727 = vshrl.u32 %v726, 7
    %v728 = vsub.s32 0, %v727
    %v729 = vrot.slane %v724, %v728
    %731 = vmatprep.subr.mxu0 0.0
    %732 = vmatpush1.msra.mxu0 %v692
    %733 = vmatprep.subr.mxu0 0.0
    %734 = vmatpush1.msra.mxu0 %v693
    %735 = vmatprep.subr.mxu0 0.0
    %736 = vmatpush1.msra.mxu0 %v694
    %737 = vmatprep.subr.mxu0 0.0
    %738 = vmatpush1.msra.mxu0 %v695
    %739 = vmatprep.subr.mxu0 0.0
    %740 = vmatpush1.msra.mxu0 %v696
    %741 = vmatprep.subr.mxu0 0.0
    %742 = vmatpush1.msra.mxu0 %v697
    %743 = vmatprep.subr.mxu0 0.0
    %744 = vmatpush1.msra.mxu0 %v698
    %745 = vmatprep.subr.mxu0 0.0
    %746 = vmatpush1.msra.mxu0 %v699
    %747 = vmatprep.subr.mxu0 0.0
    %748 = vmatpush1.msra.mxu0 %v700
    %749 = vmatprep.subr.mxu0 0.0
    %750 = vmatpush1.msra.mxu0 %v701
    %751 = vmatprep.subr.mxu0 0.0
    %752 = vmatpush1.msra.mxu0 %v702
    %753 = vmatprep.subr.mxu0 0.0
    %754 = vmatpush1.msra.mxu0 %v703
    %755 = vmatprep.subr.mxu0 0.0
    %756 = vmatpush1.msra.mxu0 %v704
    %757 = vmatprep.subr.mxu0 0.0
    %758 = vmatpush1.msra.mxu0 %v705
    %759 = vmatprep.subr.mxu0 0.0
    %760 = vmatpush1.msra.mxu0 %v706
    %761 = vmatprep.subr.mxu0 0.0
    %762 = vmatpush1.msra.mxu0 %v707
    %763 = vmatprep.subr.mxu0 0.0
    %764 = vmatpush1.msra.mxu0 %v708
    %765 = vmatprep.subr.mxu0 0.0
    %766 = vmatpush1.msra.mxu0 %v709
    %767 = vmatprep.subr.mxu0 0.0
    %768 = vmatpush1.msra.mxu0 %v710
    %769 = vmatprep.subr.mxu0 0.0
    %770 = vmatpush1.msra.mxu0 %v711
    %771 = vmatprep.subr.mxu0 0.0
    %772 = vmatpush1.msra.mxu0 %v712
    %773 = vmatprep.subr.mxu0 0.0
    %774 = vmatpush1.msra.mxu0 %v713
    %775 = vmatprep.subr.mxu0 0.0
    %776 = vmatpush1.msra.mxu0 %v714
    %777 = vmatprep.subr.mxu0 0.0
    %778 = vmatpush1.msra.mxu0 %v715
    %779 = vmatprep.subr.mxu0 0.0
    %780 = vmatpush1.msra.mxu0 %v716
    %781 = vmatprep.subr.mxu0 0.0
    %782 = vmatpush1.msra.mxu0 %v717
    %783 = vmatprep.subr.mxu0 0.0
    %784 = vmatpush1.msra.mxu0 %v718
    %785 = vmatprep.subr.mxu0 0.0
    %786 = vmatpush1.msra.mxu0 %v719
    %787 = vmatprep.subr.mxu0 0.0
    %788 = vmatpush1.msra.mxu0 %v720
    %789 = vmatprep.subr.mxu0 0.0
    %790 = vmatpush1.msra.mxu0 %v721
    %791 = vmatprep.subr.mxu0 0.0
    %792 = vmatpush1.msra.mxu0 %v722
    %793 = vmatprep.subr.mxu0 0.0
    %794 = vmatpush1.msra.mxu0 %v723
    %795 = vmatprep.mubr.f32.mxu0 %v691
    %796 = vmatmul.mubr.f32.gmra.mrb[0].mxu0 %v690
    %v797 = vpop.f32.mrb[0].mxu0
    %v798 = vadd.f32 %v729, %v797
    %v799 = vpop.f32.mrb[0].mxu0
    %800 = vdwg.mxu0
    %v801 = vld [vmem:[#allocation3] sm:$0x1]
    %v803 = vlaneseq
    %v804 = vshrl.u32 %v803, 7
    %v805 = vsub.s32 0, %v804
    %v806 = vrot.slane %v801, %v805
    %v808 = vmul.f32 %v798, %v806
    %v809 = vld [vmem:[#allocation4] sm:$0x1]
    %v811 = vlaneseq
    %v812 = vshrl.u32 %v811, 7
    %v813 = vsub.s32 0, %v812
    %v814 = vrot.slane %v809, %v813
    %v816 = vadd.f32 %v808, %v814
    %v817 = vsub.f32 0.0, %v816
    %v818 = vmul.f32 %v817, 1.442695
    %v819 = vpow.pop %v818
    %v820 = vadd.f32 %v819, 1.0
    %v821 = vrcp.pop %v820
    %v822 = vmul.f32 1.0, %v821
    %vm823 = vcmask 1024
    %824 = vst.msk [vmem:[%s17] sm:$0x3] %vm823, %v822
    // Predicated region
    $region86: #{tpu_custom_call.1} parent=1 // pred_check
      _
    $region87: #{tpu_custom_call.1} parent=1 // pred_check_branch
      %826 = sbr.rel (0) target = $region89
    $region88: #{tpu_custom_call.1} parent=1 // pred_region
      _
    $region89: #{tpu_custom_call.1} parent=1 // pred_fallthru
      _
    // Predicated region
    $region90: #{tpu_custom_call.1} parent=1 // pred_check
      _
    $region91: #{tpu_custom_call.1} parent=1 // pred_check_branch
      %828 = sbr.rel (0) target = $region93
    $region92: #{tpu_custom_call.1} parent=1 // pred_region
      _
    $region93: #{tpu_custom_call.1} parent=1 // pred_fallthru
      _
    %829 = vsyncpa [#allocation6], 1
    %830 = vsyncpa [#allocation8], 1
    %831 = vsyncpa [#allocation11], 1

</llo_original>
